<compile_context>
chip_gen: v5e
topology: v5e:2x2
jax: 0.10.0
libtpu: 0.0.40
codegen_flags: <defaults>
</compile_context>

<pallas_src>
import jax
import jax.numpy as jnp
from jax.experimental import pallas as pl
from jax.experimental.pallas import tpu as pltpu

_EPS = 1e-8                      # matches torch cosine-similarity eps clamp
_NUM_SPLITS = 2                  # megacore split (v7x); harmless on 1-TC chips
_PIPELINE_BUDGET_BYTES = 16 * 1024 * 1024   # 2 inputs x 2 buffers x tile bytes
_VMEM_LIMIT_BYTES = 32 * 1024 * 1024        # safe on v5e/v6e/v7x
_MIN_KERNEL_BYTES = 256 * 1024   # below this, pallas_call overhead dominates


def _byol_partial_kernel(x_ref, xt_ref, out_ref, acc_ref):
    """Accumulates sum_i cos(x_i, xt_i) for this core's batch slice."""
    i = pl.program_id(1)

    @pl.when(i == 0)
    def _init():
        acc_ref[0] = jnp.float32(0.0)

    x = x_ref[...]
    xt = xt_ref[...]

    # Row-wise reductions, accumulated in f32 (cast fused into the reduce).
    dot = jnp.sum(x * xt, axis=-1, keepdims=True, dtype=jnp.float32)   # (TB, 1)
    nx2 = jnp.sum(x * x, axis=-1, keepdims=True, dtype=jnp.float32)    # (TB, 1)
    nxt2 = jnp.sum(xt * xt, axis=-1, keepdims=True, dtype=jnp.float32)  # (TB, 1)

    # cos = dot / max(|x||xt|, eps) == dot * rsqrt(max(nx2*nxt2, eps^2))
    # (sqrt is monotone, so the eps clamp is preserved).  rsqrt -> EUP slot.
    cos = dot * jax.lax.rsqrt(jnp.maximum(nx2 * nxt2, jnp.float32(_EPS * _EPS)))

    acc_ref[0] += jnp.sum(cos)

    @pl.when(i == pl.num_programs(1) - 1)
    def _finalize():
        out_ref[...] = jnp.full(out_ref.shape, acc_ref[0], dtype=out_ref.dtype)


def _byol_loss_ref(x, x_target):
    """Pure-JAX reference (mirrors the PyTorch forward with cosine sim_func)."""
    dot = jnp.sum(x * x_target, axis=-1)
    denom = jnp.maximum(
        jnp.linalg.norm(x, axis=-1) * jnp.linalg.norm(x_target, axis=-1), _EPS
    )
    return 2.0 - 2.0 * jnp.mean(dot / denom)


def byol_tt_loss(x, x_target, *, force_kernel=False):
    """Pallas implementation of BYOL_TT_Loss.forward with cosine sim_func.

    Args:
      x:        (B, D) online projection.
      x_target: (B, D) target projection.
      force_kernel: run the Pallas kernel even for tiny inputs.
    Returns:
      scalar float32 loss.
    """
    assert x.shape == x_target.shape and x.ndim == 2
    B, D = x.shape
    itemsize = jnp.dtype(x.dtype).itemsize
    total_bytes = 2 * B * D * itemsize

    # Tiny inputs: launch overhead dominates, use the plain XLA path.
    if not force_kernel and total_bytes < _MIN_KERNEL_BYTES:
        return _byol_loss_ref(x, x_target)

    # ---- batch-tile sizing (generation-safe VMEM budget) -------------------
    # 2 inputs x 2 pipeline buffers x (tb * D * itemsize) <= budget.
    tb = _PIPELINE_BUDGET_BYTES // (2 * 2 * D * itemsize)
    tb = max(8, (tb // 8) * 8)
    tb = min(tb, 1024)                      # per-step overhead amortized by here
    rows_per_split = -(-B // _NUM_SPLITS)
    tb = min(tb, ((rows_per_split + 7) // 8) * 8)
    nb = -(-rows_per_split // tb)           # batch tiles per core split
    b_pad = _NUM_SPLITS * nb * tb

    if b_pad != B:
        pad = b_pad - B
        # Zero rows give dot = 0 -> cos = 0: they add nothing to the sum.
        x = jnp.pad(x, ((0, pad), (0, 0)))
        x_target = jnp.pad(x_target, ((0, pad), (0, 0)))

    grid = (_NUM_SPLITS, nb)
    in_map = lambda c, i: (c * nb + i, 0)

    partials = pl.pallas_call(
        _byol_partial_kernel,
        out_shape=jax.ShapeDtypeStruct((_NUM_SPLITS, 8, 128), jnp.float32),
        grid=grid,
        in_specs=[
            pl.BlockSpec((tb, D), in_map),
            pl.BlockSpec((tb, D), in_map),
        ],
        out_specs=pl.BlockSpec((1, 8, 128), lambda c, i: (c, 0, 0)),
        scratch_shapes=[pltpu.SMEM((1,), jnp.float32)],
        compiler_params=pltpu.CompilerParams(
            dimension_semantics=("parallel", "arbitrary"),
            vmem_limit_bytes=_VMEM_LIMIT_BYTES,
        ),
        cost_estimate=pl.CostEstimate(
            flops=6 * B * D,
            transcendentals=B,
            bytes_accessed=total_bytes + _NUM_SPLITS * 8 * 128 * 4,
        ),
    )(x, x_target)

    cos_sum = jnp.sum(partials[:, 0, 0])
    # Divide by the *true* batch size (padded rows contributed 0).
    return 2.0 - 2.0 * cos_sum / jnp.float32(B)


if __name__ == "__main__":
    key = jax.random.PRNGKey(0)
    k1, k2, k3, k4 = jax.random.split(key, 4)

    # 1) Small representation tensors (batch, hidden) — force the kernel path.
    B1, D1 = 8, 32
    x1 = jax.random.normal(k1, (B1, D1), dtype=jnp.float32)
    xt1 = jax.random.normal(k2, (B1, D1), dtype=jnp.float32)
    loss1 = jax.block_until_ready(byol_tt_loss(x1, xt1, force_kernel=True))
    ref1 = jax.block_until_ready(_byol_loss_ref(x1, xt1))
    assert jnp.allclose(loss1, ref1, atol=1e-5, rtol=1e-5), (loss1, ref1)

    # 2) Larger shape exercising batch tiling, B % tile != 0 padding and the
    #    2-way core split.
    B2, D2 = 500, 256
    x2 = jax.random.normal(k3, (B2, D2), dtype=jnp.float32)
    xt2 = jax.random.normal(k4, (B2, D2), dtype=jnp.float32)
    loss2 = jax.block_until_ready(byol_tt_loss(x2, xt2))
    ref2 = jax.block_until_ready(_byol_loss_ref(x2, xt2))
    assert jnp.allclose(loss2, ref2, atol=1e-5, rtol=1e-5), (loss2, ref2)

    print("KERNEL_OK")
</pallas_src>

<mosaic_0001>
module attributes {stable_mosaic.version = 11 : i64} {
  func.func @_byol_partial_kernel(%arg0: i32, %arg1: i32, %arg2: memref<8x32xf32, #tpu.memory_space<vmem>>, %arg3: memref<8x32xf32, #tpu.memory_space<vmem>>, %arg4: memref<1x8x128xf32, #tpu.memory_space<vmem>>, %arg5: memref<1xf32, #tpu.memory_space<smem>>) attributes {dimension_semantics = [#tpu.dimension_semantics<parallel>, #tpu.dimension_semantics<arbitrary>], iteration_bounds = array<i64: 2, 1>, scalar_prefetch = 0 : i64, scratch_operands = 1 : i64, tpu.core_type = #tpu.core_type<tc>, window_params = [{transform_indices = @transform_0, window_bounds = array<i64: 8, 32>}, {transform_indices = @transform_1, window_bounds = array<i64: 8, 32>}, {transform_indices = @transform_2, window_bounds = array<i64: 1, 8, 128>}]} {
    %c0_i32 = arith.constant 0 : i32
    %0 = arith.cmpi eq, %arg1, %c0_i32 : i32
    %1 = arith.extui %0 : i1 to i32
    %c0_i32_0 = arith.constant 0 : i32
    %2 = arith.cmpi ne, %1, %c0_i32_0 : i32
    scf.if %2 {
      %cst_12 = arith.constant 0.000000e+00 : f32
      %c0_13 = arith.constant 0 : index
      %29 = memref.load %arg5[%c0_13] : memref<1xf32, #tpu.memory_space<smem>>
      memref.store %cst_12, %arg5[%c0_13] : memref<1xf32, #tpu.memory_space<smem>>
    } else {
    }
    %c0 = arith.constant 0 : index
    %c0_1 = arith.constant 0 : index
    %3 = vector.load %arg2[%c0, %c0_1] : memref<8x32xf32, #tpu.memory_space<vmem>>, vector<8x32xf32>
    %c0_2 = arith.constant 0 : index
    %c0_3 = arith.constant 0 : index
    %4 = vector.load %arg3[%c0_2, %c0_3] : memref<8x32xf32, #tpu.memory_space<vmem>>, vector<8x32xf32>
    %5 = arith.mulf %3, %4 : vector<8x32xf32>
    %cst = arith.constant dense<0.000000e+00> : vector<8xf32>
    %6 = vector.multi_reduction <add>, %5, %cst [1] : vector<8x32xf32> to vector<8xf32>
    %7 = vector.shape_cast %6 : vector<8xf32> to vector<8x1xf32>
    %8 = arith.mulf %3, %3 : vector<8x32xf32>
    %cst_4 = arith.constant dense<0.000000e+00> : vector<8xf32>
    %9 = vector.multi_reduction <add>, %8, %cst_4 [1] : vector<8x32xf32> to vector<8xf32>
    %10 = vector.shape_cast %9 : vector<8xf32> to vector<8x1xf32>
    %11 = arith.mulf %4, %4 : vector<8x32xf32>
    %cst_5 = arith.constant dense<0.000000e+00> : vector<8xf32>
    %12 = vector.multi_reduction <add>, %11, %cst_5 [1] : vector<8x32xf32> to vector<8xf32>
    %13 = vector.shape_cast %12 : vector<8xf32> to vector<8x1xf32>
    %14 = arith.mulf %10, %13 : vector<8x1xf32>
    %cst_6 = arith.constant 1.000000e-16 : f32
    %15 = vector.broadcast %cst_6 : f32 to vector<8x1xf32>
    %16 = arith.maximumf %14, %15 : vector<8x1xf32>
    %17 = math.rsqrt %16 : vector<8x1xf32>
    %18 = arith.mulf %7, %17 : vector<8x1xf32>
    %c0_7 = arith.constant 0 : index
    %19 = memref.load %arg5[%c0_7] : memref<1xf32, #tpu.memory_space<smem>>
    %20 = vector.shape_cast %18 : vector<8x1xf32> to vector<1x8x1xf32>
    %cst_8 = arith.constant dense<0.000000e+00> : vector<1xf32>
    %21 = vector.multi_reduction <add>, %20, %cst_8 [1, 2] : vector<1x8x1xf32> to vector<1xf32>
    %22 = vector.shape_cast %21 : vector<1xf32> to vector<1x1x1xf32>
    %23 = vector.extract %22[0, 0, 0] : f32 from vector<1x1x1xf32>
    %24 = arith.addf %19, %23 : f32
    %c0_9 = arith.constant 0 : index
    %25 = memref.load %arg5[%c0_9] : memref<1xf32, #tpu.memory_space<smem>>
    memref.store %24, %arg5[%c0_9] : memref<1xf32, #tpu.memory_space<smem>>
    %c0_i32_10 = arith.constant 0 : i32
    %26 = arith.cmpi eq, %arg1, %c0_i32_10 : i32
    %27 = arith.extui %26 : i1 to i32
    %c0_i32_11 = arith.constant 0 : i32
    %28 = arith.cmpi ne, %27, %c0_i32_11 : i32
    scf.if %28 {
      %c0_12 = arith.constant 0 : index
      %29 = memref.load %arg5[%c0_12] : memref<1xf32, #tpu.memory_space<smem>>
      %30 = vector.broadcast %29 : f32 to vector<1x8x128xf32>
      %c0_13 = arith.constant 0 : index
      %c0_14 = arith.constant 0 : index
      %c0_15 = arith.constant 0 : index
      %31 = vector.load %arg4[%c0_13, %c0_14, %c0_15] : memref<1x8x128xf32, #tpu.memory_space<vmem>>, vector<1x8x128xf32>
      tpu.vector_store %arg4[%c0_13, %c0_14, %c0_15], %30 {strides = array<i32>} : memref<1x8x128xf32, #tpu.memory_space<vmem>>, vector<1x8x128xf32>,
    } else {
    }
    return
  }
  func.func @transform_0(%arg0: i32, %arg1: i32) -> (i32, i32) {
    %c1_i32 = arith.constant 1 : i32
    %0 = arith.muli %arg0, %c1_i32 : i32
    %1 = arith.addi %0, %arg1 : i32
    %c0_i32 = arith.constant 0 : i32
    %c0_i32_0 = arith.constant 0 : i32
    return %1, %c0_i32 : i32, i32
  }
  func.func @transform_1(%arg0: i32, %arg1: i32) -> (i32, i32) {
    %c1_i32 = arith.constant 1 : i32
    %0 = arith.muli %arg0, %c1_i32 : i32
    %1 = arith.addi %0, %arg1 : i32
    %c0_i32 = arith.constant 0 : i32
    %c0_i32_0 = arith.constant 0 : i32
    return %1, %c0_i32 : i32, i32
  }
  func.func @transform_2(%arg0: i32, %arg1: i32) -> (i32, i32, i32) {
    %c0_i32 = arith.constant 0 : i32
    %c0_i32_0 = arith.constant 0 : i32
    %c0_i32_1 = arith.constant 0 : i32
    return %arg0, %c0_i32, %c0_i32_0 : i32, i32, i32
  }
}

</mosaic_0001>

<llo_original>
// kernel: tpu_custom_call.1
$region0: #{tpu_custom_call.1}
  #allocation0 [shape = 'u32[]', space=smem, size = 0x4, offset = 0x4, fixed_abs, tag = 'smem constant byte address 0x4 - core index']
  #allocation1 [shape = 'u32[72,128]{1,0:T(1,128)}', space=vmem, size = 0x9000, scoped, tag = 'internal scratch']
  #allocation2 [shape = 'f32[1]{0:T(128)}', space=smem, size = 0x200, scoped, tag = 'scratch operand']
  %s0 = inlined_call_operand.hbm [shape: f32[16,32], index: 0, kind: input, shape index: {}]
  %s1 = inlined_call_operand.hbm [shape: f32[16,32], index: 1, kind: input, shape index: {}]
  %s2 = inlined_call_operand.hbm [shape: f32[2,8,128], index: 2, kind: output, shape index: {}]
  %s3 = sld [smem:[#allocation0]]
  $region57: #{tpu_custom_call.1} parent=0
    _
  %s5 = ssub.s32 1, %s3
  %s6 = scalar_select 0, %s5, %s3
  $region1: #{tpu_custom_call.1} parent=0
    #allocation3 [shape = 'u8[8192]{0}', space=vmem, size = 0x2000, scoped, tag = 'input window, operand 0']
    #allocation4 [shape = 's32[2]{0}', space=sflag, size = 0x8, scoped, tag = 'scoped memory for tpu_custom_call.1']
    #allocation5 [shape = 's32[2]{0}', space=sflag, size = 0x8, scoped, tag = 'scoped memory for tpu_custom_call.1']
    #allocation6 [shape = 'u8[8192]{0}', space=vmem, size = 0x2000, scoped, tag = 'input window, operand 1']
    #allocation7 [shape = 's32[2]{0}', space=sflag, size = 0x8, scoped, tag = 'scoped memory for tpu_custom_call.1']
    #allocation8 [shape = 'u8[8192]{0}', space=vmem, size = 0x2000, scoped, tag = 'output window, operand 0']
    %7 = vsyncpa [#allocation4], 0
    %s8 = scalar_lea.sflag [#allocation4], 1
    %9 = vsyncpa %s8, 0
    %10 = vsyncpa [#allocation7], 0
    %s11 = scalar_lea.sflag [#allocation7], 1
    %12 = vsyncpa %s11, 0
    %13 = vsyncpa [#allocation5], 0
    %s14 = scalar_lea.sflag [#allocation5], 1
    %15 = vsyncpa %s14, 0
    loop: start=0, step=1, limit=4
    $region2: #{tpu_custom_call.1} parent=1 // loop_pre_header
      _
    $region3: #{tpu_custom_call.1} parent=1 // loop_header
      %s17 = sphi 0, %s21
      %p18 = scmp.ge.s32.totalorder %s17, 4
      %s24 = sphi 0, %s36
      %s25 = sphi 0, %s32
      %s26 = sphi 0, %s24
      %s27 = sphi 0, %s25
      %s28 = sphi 0, %s26
      %s29 = sphi 0, %s27
      %s41 = sphi 0, %s43
      %s44 = sphi 0, %s41
      %s45 = sphi 0, %s44
      %s61 = sphi 0, %s45
      %s69 = sphi 0, %s71
      %s72 = sphi 0, %s69
      %s73 = sphi 0, %s72
      %s89 = sphi 0, %s73
      %s95 = sphi 0, %s97
      %s98 = sphi 0, %s95
      %s99 = sphi 0, %s98
      %s115 = sphi 0, %s99
    $region4: #{tpu_custom_call.1} parent=1 // loop_header_branch
      %20 = sbr.rel (%p18) target = $region8
    $region5: #{tpu_custom_call.1} parent=1 // loop_body
      %s22 = ssub.s32 %s17, 1
      %s23 = ssub.s32 %s17, 2
      %s30 = sadd.s32 1, %s25
      %p31 = scmp.ge.s32.totalorder %s30, 1
      %s32 = scalar_select %p31, 0, %s30
      %s33 = sadd.s32 1, %s24
      %s34 = scalar_select %p31, %s33, %s24
      %p35 = scmp.ge.s32.totalorder %s34, 2
      %s36 = scalar_select %p35, 0, %s34
      %s37 = sadd.s32 %s24, %s25
      %s38 = sadd.s32 %s36, %s32
      %s39 = ssub.s32 %s37, %s38
      %p40 = scmp.eq.s32.totalorder %s39, 0
      %s42 = sadd.s32 %s41, 1
      %s43 = scalar_select %p40, %s41, %s42
      %p46 = pneg %p40
      %p47 = scmp.eq.s32.totalorder %s17, 1
      %p48 = por %p46, %p47
      %p49 = scmp.ne.s32.totalorder %s41, %s44
      %p50 = scmp.eq.s32.totalorder %s17, 0
      %p51 = por %p49, %p50
      %p52 = scmp.ne.s32.totalorder %s41, %s44
      %p53 = scmp.eq.s32.totalorder %s22, 1
      %p54 = por %p52, %p53
      %p55 = scmp.ne.s32.totalorder %s44, %s45
      %p56 = scmp.eq.s32.totalorder %s22, 0
      %p57 = por %p55, %p56
      %p58 = scmp.ne.s32.totalorder %s44, %s45
      %p59 = scmp.eq.s32.totalorder %s23, 1
      %p60 = por %p58, %p59
      %p62 = scmp.ne.s32.totalorder %s45, %s61
      %p63 = scmp.eq.s32.totalorder %s23, 0
      %p64 = por %p62, %p63
      %s65 = sadd.s32 %s24, %s25
      %s66 = sadd.s32 %s36, %s32
      %s67 = ssub.s32 %s65, %s66
      %p68 = scmp.eq.s32.totalorder %s67, 0
      %s70 = sadd.s32 %s69, 1
      %s71 = scalar_select %p68, %s69, %s70
      %p74 = pneg %p68
      %p75 = scmp.eq.s32.totalorder %s17, 1
      %p76 = por %p74, %p75
      %p77 = scmp.ne.s32.totalorder %s69, %s72
      %p78 = scmp.eq.s32.totalorder %s17, 0
      %p79 = por %p77, %p78
      %p80 = scmp.ne.s32.totalorder %s69, %s72
      %p81 = scmp.eq.s32.totalorder %s22, 1
      %p82 = por %p80, %p81
      %p83 = scmp.ne.s32.totalorder %s72, %s73
      %p84 = scmp.eq.s32.totalorder %s22, 0
      %p85 = por %p83, %p84
      %p86 = scmp.ne.s32.totalorder %s72, %s73
      %p87 = scmp.eq.s32.totalorder %s23, 1
      %p88 = por %p86, %p87
      %p90 = scmp.ne.s32.totalorder %s73, %s89
      %p91 = scmp.eq.s32.totalorder %s23, 0
      %p92 = por %p90, %p91
      %s93 = ssub.s32 %s24, %s36
      %p94 = scmp.eq.s32.totalorder %s93, 0
      %s96 = sadd.s32 %s95, 1
      %s97 = scalar_select %p94, %s95, %s96
      %p100 = pneg %p94
      %p101 = scmp.eq.s32.totalorder %s17, 1
      %p102 = por %p100, %p101
      %p103 = scmp.ne.s32.totalorder %s95, %s98
      %p104 = scmp.eq.s32.totalorder %s17, 0
      %p105 = por %p103, %p104
      %p106 = scmp.ne.s32.totalorder %s95, %s98
      %p107 = scmp.eq.s32.totalorder %s22, 1
      %p108 = por %p106, %p107
      %p109 = scmp.ne.s32.totalorder %s98, %s99
      %p110 = scmp.eq.s32.totalorder %s22, 0
      %p111 = por %p109, %p110
      %p112 = scmp.ne.s32.totalorder %s98, %s99
      %p113 = scmp.eq.s32.totalorder %s23, 1
      %p114 = por %p112, %p113
      %p116 = scmp.ne.s32.totalorder %s99, %s115
      %p117 = scmp.eq.s32.totalorder %s23, 0
      %p118 = por %p116, %p117
      %p119 = scmp.le.s32.totalorder 1, %s17
      %p120 = scmp.lt.s32.totalorder %s17, 3
      %p121 = pnand %p119, %p120
      %p122 = pneg %p121
      // Predicated region
      $region9: #{tpu_custom_call.1} parent=5 // pred_check
        _
      $region10: #{tpu_custom_call.1} parent=5 // pred_check_branch
        %124 = sbr.rel (%p121) target = $region12
      $region11: #{tpu_custom_call.1} parent=5 // pred_region
        %s125 = ssub.s32 %s17, 1
      $region12: #{tpu_custom_call.1} parent=5 // pred_fallthru
        _
      %p126 = scmp.lt.s32.totalorder %s17, 2
      // Predicated region
      $region13: #{tpu_custom_call.1} parent=5 // pred_check
        %p127 = pneg %p126
      $region14: #{tpu_custom_call.1} parent=5 // pred_check_branch
        %129 = sbr.rel (%p127) target = $region16
      $region15: #{tpu_custom_call.1} parent=5 // pred_region
        // Predicated region
        $region17: #{tpu_custom_call.1} parent=15 // pred_check
          %p130 = pneg %p51
        $region18: #{tpu_custom_call.1} parent=15 // pred_check_branch
          %132 = sbr.rel (%p130) target = $region20
        $region19: #{tpu_custom_call.1} parent=15 // pred_region
          %s133 = sand.u32 %s41, 1
          %s134 = scalar_lea.sflag [#allocation4], %s133
          %s135 = sand.u32 %s41, 1
          %s136 = smul.addr %s135, 8
          %s137 = scalar_lea.vmem [#allocation3], %s136
          %s138 = sadd.s32 %s24, %s25
          %140 = vsyncadd %s134, 0
          %s141 = smul.addr %s138, 8
          %s142 = scalar_lea.hbm %s0, %s141
          %s144 = sshll.u32 %s142, 4
          %s145 = int_to_ptr.hbm [resolvable:$true] %s144
          %s146 = sshll.u32 %s137, 4
          %s147 = int_to_ptr.vmem [resolvable:$true] %s146
          %149 = dma.hbm_to_vmem [thread:$0]  %s145, 128, %s147, %s134
        $region20: #{tpu_custom_call.1} parent=15 // pred_fallthru
          _
        // Predicated region
        $region21: #{tpu_custom_call.1} parent=15 // pred_check
          %p150 = pneg %p79
        $region22: #{tpu_custom_call.1} parent=15 // pred_check_branch
          %152 = sbr.rel (%p150) target = $region24
        $region23: #{tpu_custom_call.1} parent=15 // pred_region
          %s153 = sand.u32 %s69, 1
          %s154 = scalar_lea.sflag [#allocation7], %s153
          %s155 = sand.u32 %s69, 1
          %s156 = smul.addr %s155, 8
          %s157 = scalar_lea.vmem [#allocation6], %s156
          %s158 = sadd.s32 %s24, %s25
          %160 = vsyncadd %s154, 0
          %s161 = smul.addr %s158, 8
          %s162 = scalar_lea.hbm %s1, %s161
          %s164 = sshll.u32 %s162, 4
          %s165 = int_to_ptr.hbm [resolvable:$true] %s164
          %s166 = sshll.u32 %s157, 4
          %s167 = int_to_ptr.vmem [resolvable:$true] %s166
          %169 = dma.hbm_to_vmem [thread:$0]  %s165, 128, %s167, %s154
        $region24: #{tpu_custom_call.1} parent=15 // pred_fallthru
          _
      $region16: #{tpu_custom_call.1} parent=5 // pred_fallthru
        _
      %p170 = scmp.le.s32.totalorder 1, %s17
      %p171 = scmp.lt.s32.totalorder %s17, 3
      %p172 = pnand %p170, %p171
      %p173 = pneg %p172
      // Predicated region
      $region25: #{tpu_custom_call.1} parent=5 // pred_check
        _
      $region26: #{tpu_custom_call.1} parent=5 // pred_check_branch
        %175 = sbr.rel (%p172) target = $region28
      $region27: #{tpu_custom_call.1} parent=5 // pred_region
        %s176 = ssub.s32 %s17, 1
        %s177 = sand.u32 %s44, 1
        %s178 = scalar_lea.sflag [#allocation4], %s177
        %s179 = sand.u32 %s44, 1
        %s180 = smul.addr %s179, 8
        %s181 = scalar_lea.vmem [#allocation3], %s180
        // Predicated region
        $region29: #{tpu_custom_call.1} parent=27 // pred_check
          %p182 = pneg %p57
        $region30: #{tpu_custom_call.1} parent=27 // pred_check_branch
          %184 = sbr.rel (%p182) target = $region32
        $region31: #{tpu_custom_call.1} parent=27 // pred_region
          %186 = dma.done %s178, 128
        $region32: #{tpu_custom_call.1} parent=27 // pred_fallthru
          _
        %s187 = sand.u32 %s72, 1
        %s188 = scalar_lea.sflag [#allocation7], %s187
        %s189 = sand.u32 %s72, 1
        %s190 = smul.addr %s189, 8
        %s191 = scalar_lea.vmem [#allocation6], %s190
        // Predicated region
        $region33: #{tpu_custom_call.1} parent=27 // pred_check
          %p192 = pneg %p85
        $region34: #{tpu_custom_call.1} parent=27 // pred_check_branch
          %194 = sbr.rel (%p192) target = $region36
        $region35: #{tpu_custom_call.1} parent=27 // pred_region
          %196 = dma.done %s188, 128
        $region36: #{tpu_custom_call.1} parent=27 // pred_fallthru
          _
        %s197 = sand.u32 %s44, 1
        %s198 = scalar_lea.sflag [#allocation4], %s197
        %s199 = sand.u32 %s44, 1
        %s200 = smul.addr %s199, 8
        %s201 = scalar_lea.vmem [#allocation3], %s200
        %p202 = pneg %p57
        %p203 = pneg %p54
        %s204 = sand.u32 %s72, 1
        %s205 = scalar_lea.sflag [#allocation7], %s204
        %s206 = sand.u32 %s72, 1
        %s207 = smul.addr %s206, 8
        %s208 = scalar_lea.vmem [#allocation6], %s207
        %p209 = pneg %p85
        %p210 = pneg %p82
        %p211 = pneg %p111
        %p212 = pneg %p108
        %s213 = sand.u32 %s98, 1
        %s214 = scalar_lea.sflag [#allocation5], %s213
        %s215 = sand.u32 %s98, 1
        %s216 = smul.addr %s215, 8
        %s217 = scalar_lea.vmem [#allocation8], %s216
        %s218 = sadd.s32 %s26, %s27
        %s219 = sadd.s32 %s26, %s27
        %p220 = scmp.eq.s32.totalorder %s27, 0
        // Predicated region
        $region37: #{tpu_custom_call.1} parent=27 // pred_check
          %p221 = pneg %p220
        $region38: #{tpu_custom_call.1} parent=27 // pred_check_branch
          %223 = sbr.rel (%p221) target = $region40
        $region39: #{tpu_custom_call.1} parent=27 // pred_region
          %s224 = scalar_lea.smem [#allocation2], 0
          %225 = sst [smem:[%s224]] 0.0
        $region40: #{tpu_custom_call.1} parent=27 // pred_fallthru
          _
        %v226 = vld [vmem:[%s181] sm:$0xff]
        %v227 = vld [vmem:[%s191] sm:$0xff]
        %v228 = vmul.f32 %v226, %v227
        %vm229 = vcmask 261120
        %v230 = vsel %vm229, %v228, 0.0
        %231 = vadd.xlane.f32.xlu0 %v230
        %v232 = vpop.xlane.xlu0 %231
        %v233 = vmul.f32 %v226, %v226
        %v234 = vsel %vm229, %v233, 0.0
        %235 = vadd.xlane.f32.xlu0 %v234
        %v236 = vpop.xlane.xlu0 %235
        %v237 = vmul.f32 %v227, %v227
        %v238 = vsel %vm229, %v237, 0.0
        %239 = vadd.xlane.f32.xlu0 %v238
        %v240 = vpop.xlane.xlu0 %239
        %v241 = vmul.f32 %v236, %v240
        %v242 = vmax.f32 %v241, 1e-16
        %v243 = vrsqrt.pop %v242
        %v244 = vmul.f32 %v243, %v242
        %v245 = vmul.f32 %v244, %v243
        %v246 = vmul.f32 0.5, %v245
        %v247 = vsub.f32 1.5, %v246
        %v248 = vmul.f32 %v243, %v247
        %vm249 = vweird.f32 %v242
        %vm250 = vweird.f32 %v243
        %vm251 = vmor %vm249, %vm250
        %v252 = vsel %vm251, %v243, %v248
        %v253 = vmul.f32 %v232, %v252
        %s254 = sld [smem:[#allocation2]]
        %vm255 = vcmask 7168
        %v256 = vsel %vm255, %v253, 0.0
        %257 = vadd.xlane.f32.xlu0 %v256
        %v258 = vpop.xlane.xlu0 %257
        %v259 = vrot.slane %v258, 4
        %v260 = vadd.f32 %v258, %v259
        %v261 = vrot.slane %v260, 2
        %v262 = vadd.f32 %v260, %v261
        %v263 = vrot.slane %v262, 1
        %v264 = vadd.f32 %v262, %v263
        %s265 = vtos %v264
        %s266 = sadd.f32 %s254, %s265
        %s267 = scalar_lea.smem [#allocation2], 0
        %268 = sst [smem:[%s267]] %s266
        // Predicated region
        $region41: #{tpu_custom_call.1} parent=27 // pred_check
          %p269 = pneg %p220
        $region42: #{tpu_custom_call.1} parent=27 // pred_check_branch
          %271 = sbr.rel (%p269) target = $region44
        $region43: #{tpu_custom_call.1} parent=27 // pred_region
          %s272 = sld [smem:[#allocation2]]
          %v273 = vstv %s272
          %274 = vst [vmem:[%s217] sm:$0xff] %v273
        $region44: #{tpu_custom_call.1} parent=27 // pred_fallthru
          _
        %s275 = sand.u32 %s98, 1
        %s276 = scalar_lea.sflag [#allocation5], %s275
        %s277 = sand.u32 %s98, 1
        %s278 = smul.addr %s277, 8
        %s279 = scalar_lea.vmem [#allocation8], %s278
        // Predicated region
        $region45: #{tpu_custom_call.1} parent=27 // pred_check
          %p280 = pneg %p108
        $region46: #{tpu_custom_call.1} parent=27 // pred_check_branch
          %282 = sbr.rel (%p280) target = $region48
        $region47: #{tpu_custom_call.1} parent=27 // pred_region
          %284 = vsyncadd %s276, 0
          %s285 = smul.addr %s26, 8
          %s286 = scalar_lea.hbm %s2, %s285
          %s288 = sshll.u32 %s279, 4
          %s289 = int_to_ptr.vmem [resolvable:$true] %s288
          %s290 = sshll.u32 %s286, 4
          %s291 = int_to_ptr.hbm [resolvable:$true] %s290
          %293 = dma.vmem_to_hbm [thread:$0]  %s289, 128, %s291, %s276
        $region48: #{tpu_custom_call.1} parent=27 // pred_fallthru
          _
      $region28: #{tpu_custom_call.1} parent=5 // pred_fallthru
        _
      %p294 = scmp.le.s32.totalorder 2, %s17
      // Predicated region
      $region49: #{tpu_custom_call.1} parent=5 // pred_check
        %p295 = pneg %p294
      $region50: #{tpu_custom_call.1} parent=5 // pred_check_branch
        %297 = sbr.rel (%p295) target = $region52
      $region51: #{tpu_custom_call.1} parent=5 // pred_region
        %s298 = ssub.s32 %s17, 2
        // Predicated region
        $region53: #{tpu_custom_call.1} parent=51 // pred_check
          %p299 = pneg %p114
        $region54: #{tpu_custom_call.1} parent=51 // pred_check_branch
          %301 = sbr.rel (%p299) target = $region56
        $region55: #{tpu_custom_call.1} parent=51 // pred_region
          %s302 = sand.u32 %s99, 1
          %s303 = scalar_lea.sflag [#allocation5], %s302
          %s304 = sand.u32 %s99, 1
          %s305 = smul.addr %s304, 8
          %s306 = scalar_lea.vmem [#allocation8], %s305
          %308 = dma.done %s303, 128
        $region56: #{tpu_custom_call.1} parent=51 // pred_fallthru
          _
      $region52: #{tpu_custom_call.1} parent=5 // pred_fallthru
        _
    $region6: #{tpu_custom_call.1} parent=1 // loop_footer
      %s21 = sadd.s32 1, %s17
    $region7: #{tpu_custom_call.1} parent=1 // loop_footer_branch
      %16 = sbr.rel target = $region3
    $region8: #{tpu_custom_call.1} parent=1 // loop_exit
      _
    %309 = vsyncpa [#allocation4], 1
    %s310 = scalar_lea.sflag [#allocation4], 1
    %311 = vsyncpa %s310, 1
    %312 = vsyncpa [#allocation7], 1
    %s313 = scalar_lea.sflag [#allocation7], 1
    %314 = vsyncpa %s313, 1
    %315 = vsyncpa [#allocation5], 1
    %s316 = scalar_lea.sflag [#allocation5], 1
    %317 = vsyncpa %s316, 1

</llo_original>
